<compile_context>
chip_gen: v5e
topology: v5e:2x2
jax: 0.10.0
libtpu: 0.0.40
codegen_flags: <defaults>
</compile_context>

<pallas_src>
import jax
import jax.numpy as jnp
from jax.experimental import pallas as pl
from jax.experimental.pallas import tpu as pltpu

IN_DIM = 100
CODE_DIM = 400      # 4 * 100
OFFSET_DIM = 12     # 4 * 3


def pointcodegen_kernel(x_ref,
                        wa_ref, ba_ref, wb_ref, bb_ref, wc_ref, bc_ref,
                        wcode_ref, bcode_ref, woff_ref, boff_ref,
                        code_ref, off_ref):
    """Fused both-branch MLP over one batch tile: bf16 matmuls, f32 epilogue, two direct outputs."""
    x = x_ref[...].astype(jnp.bfloat16)               # (TB, 100), in-kernel cast

    def lin(h_bf16, w_ref, b_ref):
        acc = jnp.dot(h_bf16, w_ref[...], preferred_element_type=jnp.float32)
        return acc + b_ref[...]                       # bias add in f32

    h = jnp.maximum(lin(x, wa_ref, ba_ref), 0.0)                              # (TB, 128)
    h = jnp.maximum(lin(h.astype(jnp.bfloat16), wb_ref, bb_ref), 0.0)         # (TB,  64)
    h = jnp.maximum(lin(h.astype(jnp.bfloat16), wc_ref, bc_ref), 0.0)         # (TB, 128)
    h = h.astype(jnp.bfloat16)
    # lanes 0:64 -> code branch (fc4), lanes 64:128 -> offset branch (fc8)
    code_ref[...] = lin(h[:, :64], wcode_ref, bcode_ref)                      # (TB, 400)
    off_ref[...] = lin(h[:, 64:], woff_ref, boff_ref)                         # (TB, 12)


def init_params(key):
    """PyTorch-style init U(-1/sqrt(fan_in), 1/sqrt(fan_in)).
    Weights stored transposed (in_features, out_features); biases (1, out_features)."""
    layer_dims = [(100, 64), (64, 32), (32, 64), (64, 400),    # fc1..fc4 (code branch)
                  (100, 64), (64, 32), (32, 64), (64, 12)]     # fc5..fc8 (offset branch)
    params = []
    keys = jax.random.split(key, 2 * len(layer_dims))
    for idx, (fan_in, fan_out) in enumerate(layer_dims):
        bound = 1.0 / (fan_in ** 0.5)
        w = jax.random.uniform(keys[2 * idx], (fan_in, fan_out),
                               minval=-bound, maxval=bound, dtype=jnp.float32)
        b = jax.random.uniform(keys[2 * idx + 1], (1, fan_out),
                               minval=-bound, maxval=bound, dtype=jnp.float32)
        params.append((w, b))
    return params


def fuse_params(params):
    """One-time wrapper-side fusion: layers 1-3 block-diagonal, layer 4 kept as two heads (bf16)."""
    (w1, b1), (w2, b2), (w3, b3), (w4, b4), \
        (w5, b5), (w6, b6), (w7, b7), (w8, b8) = params

    def blockdiag(a, b):
        r1, c1 = a.shape
        r2, c2 = b.shape
        out = jnp.zeros((r1 + r2, c1 + c2), jnp.float32)
        out = out.at[:r1, :c1].set(a)
        out = out.at[r1:, c1:].set(b)
        return out

    wa = jnp.concatenate([w1, w5], axis=1)                       # (100, 128)
    ba = jnp.concatenate([b1, b5], axis=1)                       # (1, 128)
    wb = blockdiag(w2, w6)                                       # (128, 64)
    bb = jnp.concatenate([b2, b6], axis=1)                       # (1, 64)
    wc = blockdiag(w3, w7)                                       # (64, 128)
    bc = jnp.concatenate([b3, b7], axis=1)                       # (1, 128)

    bf = lambda w: w.astype(jnp.bfloat16)
    return (bf(wa), ba, bf(wb), bb, bf(wc), bc,
            bf(w4), b4,     # code head   (64, 400) / (1, 400)
            bf(w8), b8)     # offset head (64, 12)  / (1, 12)


def _round_up(v, m):
    return ((v + m - 1) // m) * m


def point_code_gen(x, fused, *, max_tile=1024):
    """Returns (code (B,4,100), offset (B,4,3)) matching PointCodeGen.forward."""
    B = x.shape[0]
    max_tile = max(16, (max_tile // 16) * 16)

    # Batch tile selection.
    if B <= 16:
        TB = B                                    # single full-array block, no masking needed
    else:
        TB = min(max_tile, _round_up(B, 16))      # multiple of 16 (bf16 sublane packing)
        # Guarantee >=2 grid steps when the batch can be split, so v7x's second
        # TensorCore has work under dimension_semantics=("parallel",).
        half = _round_up(pl.cdiv(B, 2), 16)
        if pl.cdiv(B, TB) < 2 and half < TB:
            TB = half
    grid = (pl.cdiv(B, TB),)
    # NOTE: if max_tile is swept past ~2048, set pltpu.CompilerParams(vmem_limit_bytes=...)
    # (v5e scoped-VMEM default is 16 MiB; v7x has 64 MiB physical VMEM). Default tiles fit easily.

    (wa, ba, wb, bb, wc, bc, wcode, bcode, woff, boff) = fused

    def const_spec(arr):
        # full-array block, VMEM-resident across all batch tiles
        return pl.BlockSpec(arr.shape, lambda i: (0, 0))

    code2d, off2d = pl.pallas_call(
        pointcodegen_kernel,
        out_shape=(jax.ShapeDtypeStruct((B, CODE_DIM), jnp.float32),
                   jax.ShapeDtypeStruct((B, OFFSET_DIM), jnp.float32)),
        grid=grid,
        in_specs=[pl.BlockSpec((TB, IN_DIM), lambda i: (i, 0)),
                  const_spec(wa), const_spec(ba),
                  const_spec(wb), const_spec(bb),
                  const_spec(wc), const_spec(bc),
                  const_spec(wcode), const_spec(bcode),
                  const_spec(woff), const_spec(boff)],
        out_specs=(pl.BlockSpec((TB, CODE_DIM), lambda i: (i, 0)),
                   pl.BlockSpec((TB, OFFSET_DIM), lambda i: (i, 0))),
        compiler_params=pltpu.CompilerParams(
            dimension_semantics=("parallel",)),
    )(x, wa, ba, wb, bb, wc, bc, wcode, bcode, woff, boff)

    # Contiguous reshapes only (pure layout glue, no column slicing / extra HBM pass).
    return code2d.reshape(B, 4, 100), off2d.reshape(B, 4, 3)


def point_code_gen_ref(x, params):
    """Pure-JAX f32 reference (mirrors the PyTorch forward)."""
    def lin(h, p):
        return h @ p[0] + p[1]
    h1 = jax.nn.relu(lin(x, params[0]))
    h1 = jax.nn.relu(lin(h1, params[1]))
    h1 = jax.nn.relu(lin(h1, params[2]))
    code = lin(h1, params[3]).reshape(x.shape[0], 4, 100)
    h2 = jax.nn.relu(lin(x, params[4]))
    h2 = jax.nn.relu(lin(h2, params[5]))
    h2 = jax.nn.relu(lin(h2, params[6]))
    offset = lin(h2, params[7]).reshape(x.shape[0], 4, 3)
    return code, offset


if __name__ == "__main__":
    key = jax.random.PRNGKey(0)
    key_x, key_p = jax.random.split(key)

    params = init_params(key_p)
    fused = fuse_params(params)

    # Case 1: tiny batch (B=2) -> single full-array tile.
    B = 2
    x = jax.random.normal(key_x, (B, IN_DIM), dtype=jnp.float32)
    code, offset = point_code_gen(x, fused)
    jax.block_until_ready((code, offset))
    code_ref, offset_ref = point_code_gen_ref(x, params)
    assert code.shape == (B, 4, 100) and offset.shape == (B, 4, 3)
    # bf16 matmul operands with f32 accumulation -> loosened tolerance vs f32 reference
    assert jnp.allclose(code, code_ref, atol=2e-2, rtol=2e-2)
    assert jnp.allclose(offset, offset_ref, atol=2e-2, rtol=2e-2)

    # Case 2: B=40 with default tiling -> >=2-step split (TB=32, grid=2, ragged last tile).
    B2 = 40
    x2 = jax.random.normal(jax.random.PRNGKey(1), (B2, IN_DIM), dtype=jnp.float32)
    code2, offset2 = point_code_gen(x2, fused)
    jax.block_until_ready((code2, offset2))
    code2_ref, offset2_ref = point_code_gen_ref(x2, params)
    assert jnp.allclose(code2, code2_ref, atol=2e-2, rtol=2e-2)
    assert jnp.allclose(offset2, offset2_ref, atol=2e-2, rtol=2e-2)

    # Case 3: explicit small tile (B=40, TB=16 -> 3 tiles, ragged last tile) to exercise streaming.
    code3, offset3 = point_code_gen(x2, fused, max_tile=16)
    jax.block_until_ready((code3, offset3))
    assert jnp.allclose(code3, code2_ref, atol=2e-2, rtol=2e-2)
    assert jnp.allclose(offset3, offset2_ref, atol=2e-2, rtol=2e-2)

    print("KERNEL_OK")
</pallas_src>

<mosaic_0001>
module attributes {stable_mosaic.version = 11 : i64} {
  func.func @pointcodegen_kernel(%arg0: i32, %arg1: memref<2x100xf32, #tpu.memory_space<vmem>>, %arg2: memref<100x128xbf16, #tpu.memory_space<vmem>>, %arg3: memref<1x128xf32, #tpu.memory_space<vmem>>, %arg4: memref<128x64xbf16, #tpu.memory_space<vmem>>, %arg5: memref<1x64xf32, #tpu.memory_space<vmem>>, %arg6: memref<64x128xbf16, #tpu.memory_space<vmem>>, %arg7: memref<1x128xf32, #tpu.memory_space<vmem>>, %arg8: memref<64x400xbf16, #tpu.memory_space<vmem>>, %arg9: memref<1x400xf32, #tpu.memory_space<vmem>>, %arg10: memref<64x12xbf16, #tpu.memory_space<vmem>>, %arg11: memref<1x12xf32, #tpu.memory_space<vmem>>, %arg12: memref<2x400xf32, #tpu.memory_space<vmem>>, %arg13: memref<2x12xf32, #tpu.memory_space<vmem>>) attributes {dimension_semantics = [#tpu.dimension_semantics<parallel>], iteration_bounds = array<i64: 1>, scalar_prefetch = 0 : i64, scratch_operands = 0 : i64, tpu.core_type = #tpu.core_type<tc>, window_params = [{transform_indices = @transform_0, window_bounds = array<i64: 2, 100>}, {pipeline_mode = #tpu.pipeline_mode<synchronous>, transform_indices = @transform_1, window_bounds = array<i64: 100, 128>}, {pipeline_mode = #tpu.pipeline_mode<synchronous>, transform_indices = @transform_2, window_bounds = array<i64: 1, 128>}, {pipeline_mode = #tpu.pipeline_mode<synchronous>, transform_indices = @transform_3, window_bounds = array<i64: 128, 64>}, {pipeline_mode = #tpu.pipeline_mode<synchronous>, transform_indices = @transform_4, window_bounds = array<i64: 1, 64>}, {pipeline_mode = #tpu.pipeline_mode<synchronous>, transform_indices = @transform_5, window_bounds = array<i64: 64, 128>}, {pipeline_mode = #tpu.pipeline_mode<synchronous>, transform_indices = @transform_6, window_bounds = array<i64: 1, 128>}, {pipeline_mode = #tpu.pipeline_mode<synchronous>, transform_indices = @transform_7, window_bounds = array<i64: 64, 400>}, {pipeline_mode = #tpu.pipeline_mode<synchronous>, transform_indices = @transform_8, window_bounds = array<i64: 1, 400>}, {pipeline_mode = #tpu.pipeline_mode<synchronous>, transform_indices = @transform_9, window_bounds = array<i64: 64, 12>}, {pipeline_mode = #tpu.pipeline_mode<synchronous>, transform_indices = @transform_10, window_bounds = array<i64: 1, 12>}, {transform_indices = @transform_11, window_bounds = array<i64: 2, 400>}, {transform_indices = @transform_12, window_bounds = array<i64: 2, 12>}]} {
    %c0 = arith.constant 0 : index
    %c0_0 = arith.constant 0 : index
    %0 = vector.load %arg1[%c0, %c0_0] : memref<2x100xf32, #tpu.memory_space<vmem>>, vector<2x100xf32>
    %1 = arith.truncf %0 : vector<2x100xf32> to vector<2x100xbf16>
    %c0_1 = arith.constant 0 : index
    %c0_2 = arith.constant 0 : index
    %2 = vector.load %arg2[%c0_1, %c0_2] : memref<100x128xbf16, #tpu.memory_space<vmem>>, vector<100x128xbf16>
    %cst = arith.constant dense<0.000000e+00> : vector<2x128xf32>
    %3 = tpu.matmul %1, %2, %cst {dimension_numbers = #tpu.dot_dimension_numbers<[1], [0], [0], [1], [0, 0, 1, 1], [], []>} : vector<2x100xbf16>, vector<100x128xbf16>, vector<2x128xf32> -> vector<2x128xf32>
    %c0_3 = arith.constant 0 : index
    %c0_4 = arith.constant 0 : index
    %4 = vector.load %arg3[%c0_3, %c0_4] : memref<1x128xf32, #tpu.memory_space<vmem>>, vector<1x128xf32>
    %5 = vector.broadcast %4 : vector<1x128xf32> to vector<2x128xf32>
    %6 = arith.addf %3, %5 : vector<2x128xf32>
    %cst_5 = arith.constant 0.000000e+00 : f32
    %7 = vector.broadcast %cst_5 : f32 to vector<2x128xf32>
    %8 = arith.maximumf %6, %7 : vector<2x128xf32>
    %9 = arith.truncf %8 : vector<2x128xf32> to vector<2x128xbf16>
    %c0_6 = arith.constant 0 : index
    %c0_7 = arith.constant 0 : index
    %10 = vector.load %arg4[%c0_6, %c0_7] : memref<128x64xbf16, #tpu.memory_space<vmem>>, vector<128x64xbf16>
    %cst_8 = arith.constant dense<0.000000e+00> : vector<2x64xf32>
    %11 = tpu.matmul %9, %10, %cst_8 {dimension_numbers = #tpu.dot_dimension_numbers<[1], [0], [0], [1], [0, 0, 1, 1], [], []>} : vector<2x128xbf16>, vector<128x64xbf16>, vector<2x64xf32> -> vector<2x64xf32>
    %c0_9 = arith.constant 0 : index
    %c0_10 = arith.constant 0 : index
    %12 = vector.load %arg5[%c0_9, %c0_10] : memref<1x64xf32, #tpu.memory_space<vmem>>, vector<1x64xf32>
    %13 = vector.broadcast %12 : vector<1x64xf32> to vector<2x64xf32>
    %14 = arith.addf %11, %13 : vector<2x64xf32>
    %cst_11 = arith.constant 0.000000e+00 : f32
    %15 = vector.broadcast %cst_11 : f32 to vector<2x64xf32>
    %16 = arith.maximumf %14, %15 : vector<2x64xf32>
    %17 = arith.truncf %16 : vector<2x64xf32> to vector<2x64xbf16>
    %c0_12 = arith.constant 0 : index
    %c0_13 = arith.constant 0 : index
    %18 = vector.load %arg6[%c0_12, %c0_13] : memref<64x128xbf16, #tpu.memory_space<vmem>>, vector<64x128xbf16>
    %cst_14 = arith.constant dense<0.000000e+00> : vector<2x128xf32>
    %19 = tpu.matmul %17, %18, %cst_14 {dimension_numbers = #tpu.dot_dimension_numbers<[1], [0], [0], [1], [0, 0, 1, 1], [], []>} : vector<2x64xbf16>, vector<64x128xbf16>, vector<2x128xf32> -> vector<2x128xf32>
    %c0_15 = arith.constant 0 : index
    %c0_16 = arith.constant 0 : index
    %20 = vector.load %arg7[%c0_15, %c0_16] : memref<1x128xf32, #tpu.memory_space<vmem>>, vector<1x128xf32>
    %21 = vector.broadcast %20 : vector<1x128xf32> to vector<2x128xf32>
    %22 = arith.addf %19, %21 : vector<2x128xf32>
    %cst_17 = arith.constant 0.000000e+00 : f32
    %23 = vector.broadcast %cst_17 : f32 to vector<2x128xf32>
    %24 = arith.maximumf %22, %23 : vector<2x128xf32>
    %25 = arith.truncf %24 : vector<2x128xf32> to vector<2x128xbf16>
    %26 = vector.extract_strided_slice %25 {offsets = [0, 0], sizes = [2, 64], strides = [1, 1]} : vector<2x128xbf16> to vector<2x64xbf16>
    %c0_18 = arith.constant 0 : index
    %c0_19 = arith.constant 0 : index
    %27 = vector.load %arg8[%c0_18, %c0_19] : memref<64x400xbf16, #tpu.memory_space<vmem>>, vector<64x400xbf16>
    %cst_20 = arith.constant dense<0.000000e+00> : vector<2x400xf32>
    %28 = tpu.matmul %26, %27, %cst_20 {dimension_numbers = #tpu.dot_dimension_numbers<[1], [0], [0], [1], [0, 0, 1, 1], [], []>} : vector<2x64xbf16>, vector<64x400xbf16>, vector<2x400xf32> -> vector<2x400xf32>
    %c0_21 = arith.constant 0 : index
    %c0_22 = arith.constant 0 : index
    %29 = vector.load %arg9[%c0_21, %c0_22] : memref<1x400xf32, #tpu.memory_space<vmem>>, vector<1x400xf32>
    %30 = vector.broadcast %29 : vector<1x400xf32> to vector<2x400xf32>
    %31 = arith.addf %28, %30 : vector<2x400xf32>
    %c0_23 = arith.constant 0 : index
    %c0_24 = arith.constant 0 : index
    %32 = vector.load %arg12[%c0_23, %c0_24] : memref<2x400xf32, #tpu.memory_space<vmem>>, vector<2x400xf32>
    tpu.vector_store %arg12[%c0_23, %c0_24], %31 {strides = array<i32>} : memref<2x400xf32, #tpu.memory_space<vmem>>, vector<2x400xf32>,
    %33 = vector.extract_strided_slice %25 {offsets = [0, 64], sizes = [2, 64], strides = [1, 1]} : vector<2x128xbf16> to vector<2x64xbf16>
    %c0_25 = arith.constant 0 : index
    %c0_26 = arith.constant 0 : index
    %34 = vector.load %arg10[%c0_25, %c0_26] : memref<64x12xbf16, #tpu.memory_space<vmem>>, vector<64x12xbf16>
    %cst_27 = arith.constant dense<0.000000e+00> : vector<2x12xf32>
    %35 = tpu.matmul %33, %34, %cst_27 {dimension_numbers = #tpu.dot_dimension_numbers<[1], [0], [0], [1], [0, 0, 1, 1], [], []>} : vector<2x64xbf16>, vector<64x12xbf16>, vector<2x12xf32> -> vector<2x12xf32>
    %c0_28 = arith.constant 0 : index
    %c0_29 = arith.constant 0 : index
    %36 = vector.load %arg11[%c0_28, %c0_29] : memref<1x12xf32, #tpu.memory_space<vmem>>, vector<1x12xf32>
    %37 = vector.broadcast %36 : vector<1x12xf32> to vector<2x12xf32>
    %38 = arith.addf %35, %37 : vector<2x12xf32>
    %c0_30 = arith.constant 0 : index
    %c0_31 = arith.constant 0 : index
    %39 = vector.load %arg13[%c0_30, %c0_31] : memref<2x12xf32, #tpu.memory_space<vmem>>, vector<2x12xf32>
    tpu.vector_store %arg13[%c0_30, %c0_31], %38 {strides = array<i32>} : memref<2x12xf32, #tpu.memory_space<vmem>>, vector<2x12xf32>,
    return
  }
  func.func @transform_0(%arg0: i32) -> (i32, i32) {
    %c0_i32 = arith.constant 0 : i32
    %c0_i32_0 = arith.constant 0 : i32
    return %arg0, %c0_i32 : i32, i32
  }
  func.func @transform_1(%arg0: i32) -> (i32, i32) {
    %c0_i32 = arith.constant 0 : i32
    %c0_i32_0 = arith.constant 0 : i32
    %c0_i32_1 = arith.constant 0 : i32
    return %c0_i32, %c0_i32_0 : i32, i32
  }
  func.func @transform_2(%arg0: i32) -> (i32, i32) {
    %c0_i32 = arith.constant 0 : i32
    %c0_i32_0 = arith.constant 0 : i32
    %c0_i32_1 = arith.constant 0 : i32
    return %c0_i32, %c0_i32_0 : i32, i32
  }
  func.func @transform_3(%arg0: i32) -> (i32, i32) {
    %c0_i32 = arith.constant 0 : i32
    %c0_i32_0 = arith.constant 0 : i32
    %c0_i32_1 = arith.constant 0 : i32
    return %c0_i32, %c0_i32_0 : i32, i32
  }
  func.func @transform_4(%arg0: i32) -> (i32, i32) {
    %c0_i32 = arith.constant 0 : i32
    %c0_i32_0 = arith.constant 0 : i32
    %c0_i32_1 = arith.constant 0 : i32
    return %c0_i32, %c0_i32_0 : i32, i32
  }
  func.func @transform_5(%arg0: i32) -> (i32, i32) {
    %c0_i32 = arith.constant 0 : i32
    %c0_i32_0 = arith.constant 0 : i32
    %c0_i32_1 = arith.constant 0 : i32
    return %c0_i32, %c0_i32_0 : i32, i32
  }
  func.func @transform_6(%arg0: i32) -> (i32, i32) {
    %c0_i32 = arith.constant 0 : i32
    %c0_i32_0 = arith.constant 0 : i32
    %c0_i32_1 = arith.constant 0 : i32
    return %c0_i32, %c0_i32_0 : i32, i32
  }
  func.func @transform_7(%arg0: i32) -> (i32, i32) {
    %c0_i32 = arith.constant 0 : i32
    %c0_i32_0 = arith.constant 0 : i32
    %c0_i32_1 = arith.constant 0 : i32
    return %c0_i32, %c0_i32_0 : i32, i32
  }
  func.func @transform_8(%arg0: i32) -> (i32, i32) {
    %c0_i32 = arith.constant 0 : i32
    %c0_i32_0 = arith.constant 0 : i32
    %c0_i32_1 = arith.constant 0 : i32
    return %c0_i32, %c0_i32_0 : i32, i32
  }
  func.func @transform_9(%arg0: i32) -> (i32, i32) {
    %c0_i32 = arith.constant 0 : i32
    %c0_i32_0 = arith.constant 0 : i32
    %c0_i32_1 = arith.constant 0 : i32
    return %c0_i32, %c0_i32_0 : i32, i32
  }
  func.func @transform_10(%arg0: i32) -> (i32, i32) {
    %c0_i32 = arith.constant 0 : i32
    %c0_i32_0 = arith.constant 0 : i32
    %c0_i32_1 = arith.constant 0 : i32
    return %c0_i32, %c0_i32_0 : i32, i32
  }
  func.func @transform_11(%arg0: i32) -> (i32, i32) {
    %c0_i32 = arith.constant 0 : i32
    %c0_i32_0 = arith.constant 0 : i32
    return %arg0, %c0_i32 : i32, i32
  }
  func.func @transform_12(%arg0: i32) -> (i32, i32) {
    %c0_i32 = arith.constant 0 : i32
    %c0_i32_0 = arith.constant 0 : i32
    return %arg0, %c0_i32 : i32, i32
  }
}

</mosaic_0001>

<llo_original>
// kernel: tpu_custom_call.1
$region0: #{tpu_custom_call.1}
  #allocation0 [shape = 'u32[]', space=smem, size = 0x4, offset = 0x4, fixed_abs, tag = 'smem constant byte address 0x4 - core index']
  #allocation1 [shape = 'u32[72,128]{1,0:T(1,128)}', space=vmem, size = 0x9000, scoped, tag = 'internal scratch']
  %s0 = inlined_call_operand.vmem [shape: f32[2,100], index: 0, kind: input, shape index: {}]
  %s1 = inlined_call_operand.vmem [shape: bf16[100,128], index: 1, kind: input, shape index: {}]
  %s2 = inlined_call_operand.vmem [shape: f32[1,128], index: 2, kind: input, shape index: {}]
  %s3 = inlined_call_operand.vmem [shape: bf16[128,64], index: 3, kind: input, shape index: {}]
  %s4 = inlined_call_operand.vmem [shape: f32[1,64], index: 4, kind: input, shape index: {}]
  %s5 = inlined_call_operand.vmem [shape: bf16[64,128], index: 5, kind: input, shape index: {}]
  %s6 = inlined_call_operand.vmem [shape: f32[1,128], index: 6, kind: input, shape index: {}]
  %s7 = inlined_call_operand.hbm [shape: bf16[64,400], index: 7, kind: input, shape index: {}]
  %s8 = inlined_call_operand.vmem [shape: f32[1,400], index: 8, kind: input, shape index: {}]
  %s9 = inlined_call_operand.vmem [shape: bf16[64,12], index: 9, kind: input, shape index: {}]
  %s10 = inlined_call_operand.vmem [shape: f32[1,12], index: 10, kind: input, shape index: {}]
  %s11 = inlined_call_operand.hbm [shape: f32[2,400], index: 11, kind: output, shape index: {0}]
  %s12 = inlined_call_operand.hbm [shape: f32[2,12], index: 12, kind: output, shape index: {1}]
  %13 = xla_tuple %s11, %s12
  %s14 = sld [smem:[#allocation0]]
  $region66: #{tpu_custom_call.1} parent=0
    _
  %s16 = ssub.s32 1, %s14
  %s17 = scalar_select 0, %s16, %s14
  $region1: #{tpu_custom_call.1} parent=0
    #allocation2 [shape = 'u8[65536]{0}', space=vmem, size = 0x10000, scoped, tag = 'input window, operand 7, single buffered']
    #allocation3 [shape = 's32[1]{0}', space=sflag, size = 0x4, scoped, tag = 'scoped memory for tpu_custom_call.1']
    #allocation4 [shape = 's32[1]{0}', space=sflag, size = 0x4, scoped, tag = 'scoped memory for tpu_custom_call.1']
    #allocation5 [shape = 'u8[4096]{0}', space=vmem, size = 0x1000, scoped, tag = 'output window, operand 0, single buffered']
    #allocation6 [shape = 'u8[1024]{0}', space=vmem, size = 0x400, scoped, tag = 'output window, operand 1, single buffered']
    #allocation7 [shape = 's32[1]{0}', space=sflag, size = 0x4, scoped, tag = 'scoped memory for tpu_custom_call.1']
    %18 = vsyncpa [#allocation3], 0
    %19 = vsyncpa [#allocation4], 0
    %20 = vsyncpa [#allocation7], 0
    // Predicated region
    $region2: #{tpu_custom_call.1} parent=1 // pred_check
      _
    $region3: #{tpu_custom_call.1} parent=1 // pred_check_branch
      %22 = sbr.rel (0) target = $region5
    $region4: #{tpu_custom_call.1} parent=1 // pred_region
      _
    $region5: #{tpu_custom_call.1} parent=1 // pred_fallthru
      _
    // Predicated region
    $region6: #{tpu_custom_call.1} parent=1 // pred_check
      _
    $region7: #{tpu_custom_call.1} parent=1 // pred_check_branch
      %24 = sbr.rel (0) target = $region9
    $region8: #{tpu_custom_call.1} parent=1 // pred_region
      _
    $region9: #{tpu_custom_call.1} parent=1 // pred_fallthru
      _
    // Predicated region
    $region10: #{tpu_custom_call.1} parent=1 // pred_check
      _
    $region11: #{tpu_custom_call.1} parent=1 // pred_check_branch
      %26 = sbr.rel (0) target = $region13
    $region12: #{tpu_custom_call.1} parent=1 // pred_region
      _
    $region13: #{tpu_custom_call.1} parent=1 // pred_fallthru
      _
    // Predicated region
    $region14: #{tpu_custom_call.1} parent=1 // pred_check
      _
    $region15: #{tpu_custom_call.1} parent=1 // pred_check_branch
      %28 = sbr.rel (0) target = $region17
    $region16: #{tpu_custom_call.1} parent=1 // pred_region
      _
    $region17: #{tpu_custom_call.1} parent=1 // pred_fallthru
      _
    // Predicated region
    $region18: #{tpu_custom_call.1} parent=1 // pred_check
      _
    $region19: #{tpu_custom_call.1} parent=1 // pred_check_branch
      %30 = sbr.rel (0) target = $region21
    $region20: #{tpu_custom_call.1} parent=1 // pred_region
      _
    $region21: #{tpu_custom_call.1} parent=1 // pred_fallthru
      _
    // Predicated region
    $region22: #{tpu_custom_call.1} parent=1 // pred_check
      _
    $region23: #{tpu_custom_call.1} parent=1 // pred_check_branch
      %32 = sbr.rel (0) target = $region25
    $region24: #{tpu_custom_call.1} parent=1 // pred_region
      _
    $region25: #{tpu_custom_call.1} parent=1 // pred_fallthru
      _
    // Predicated region
    $region26: #{tpu_custom_call.1} parent=1 // pred_check
      _
    $region27: #{tpu_custom_call.1} parent=1 // pred_check_branch
      %34 = sbr.rel (0) target = $region29
    $region28: #{tpu_custom_call.1} parent=1 // pred_region
      _
    $region29: #{tpu_custom_call.1} parent=1 // pred_fallthru
      _
    // Predicated region
    $region30: #{tpu_custom_call.1} parent=1 // pred_check
      _
    $region31: #{tpu_custom_call.1} parent=1 // pred_check_branch
      %36 = sbr.rel (0) target = $region33
    $region32: #{tpu_custom_call.1} parent=1 // pred_region
      %38 = vsyncadd [#allocation3], 0
      %s39 = sshll.u32 %s7, 4
      %s40 = int_to_ptr.hbm [resolvable:$true] %s39
      %s41 = sshll.u32 [#allocation2], 4
      %s42 = int_to_ptr.vmem [resolvable:$true] %s41
      %47 = dma.hbm_to_vmem [thread:$0]  %s40, 2048, %s42, [#allocation3], 256, 256, 16
    $region33: #{tpu_custom_call.1} parent=1 // pred_fallthru
      _
    // Predicated region
    $region34: #{tpu_custom_call.1} parent=1 // pred_check
      _
    $region35: #{tpu_custom_call.1} parent=1 // pred_check_branch
      %49 = sbr.rel (0) target = $region37
    $region36: #{tpu_custom_call.1} parent=1 // pred_region
      _
    $region37: #{tpu_custom_call.1} parent=1 // pred_fallthru
      _
    // Predicated region
    $region38: #{tpu_custom_call.1} parent=1 // pred_check
      _
    $region39: #{tpu_custom_call.1} parent=1 // pred_check_branch
      %51 = sbr.rel (0) target = $region41
    $region40: #{tpu_custom_call.1} parent=1 // pred_region
      _
    $region41: #{tpu_custom_call.1} parent=1 // pred_fallthru
      _
    // Predicated region
    $region42: #{tpu_custom_call.1} parent=1 // pred_check
      _
    $region43: #{tpu_custom_call.1} parent=1 // pred_check_branch
      %53 = sbr.rel (0) target = $region45
    $region44: #{tpu_custom_call.1} parent=1 // pred_region
      _
    $region45: #{tpu_custom_call.1} parent=1 // pred_fallthru
      _
    // Predicated region
    $region46: #{tpu_custom_call.1} parent=1 // pred_check
      _
    $region47: #{tpu_custom_call.1} parent=1 // pred_check_branch
      %55 = sbr.rel (0) target = $region49
    $region48: #{tpu_custom_call.1} parent=1 // pred_region
      %57 = dma.done [#allocation3], 2048
    $region49: #{tpu_custom_call.1} parent=1 // pred_fallthru
      _
    %v59 = vld [vmem:[%s0] sm:$0x3]
    %v60 = vpack.c.bf16 %v59, %v59
    %v61 = vld [vmem:[%s1] sm:$0xf]
    %v62 = vld [vmem:[%s1 + $0x4] sm:$0xf]
    %v63 = vld [vmem:[%s1 + $0x8] sm:$0xf]
    %v64 = vld [vmem:[%s1 + $0xc] sm:$0xf]
    %v65 = vld [vmem:[%s1 + $0x10] sm:$0xf]
    %v66 = vld [vmem:[%s1 + $0x14] sm:$0xf]
    %v67 = vld [vmem:[%s1 + $0x18] sm:$0xf]
    %v68 = vld [vmem:[%s1 + $0x1c] sm:$0xf]
    %v69 = vld [vmem:[%s1 + $0x20] sm:$0xf]
    %v70 = vld [vmem:[%s1 + $0x24] sm:$0xf]
    %v71 = vld [vmem:[%s1 + $0x28] sm:$0xf]
    %v72 = vld [vmem:[%s1 + $0x2c] sm:$0xf]
    %v73 = vld [vmem:[%s1 + $0x30] sm:$0x3]
    %v74 = vld [vmem:[%s2] sm:$0x1]
    %v76 = vperm.slane %v74, 0
    %v91 = vunpack.c.l.b16 %v61
    %v92 = vunpack.c.l.b16 %v62
    %v93 = vunpack.c.l.b16 %v63
    %v94 = vunpack.c.l.b16 %v64
    %v95 = vunpack.c.l.b16 %v65
    %v96 = vunpack.c.l.b16 %v66
    %v97 = vunpack.c.l.b16 %v67
    %v98 = vunpack.c.l.b16 %v68
    %v99 = vunpack.c.l.b16 %v69
    %v100 = vunpack.c.l.b16 %v70
    %v101 = vunpack.c.l.b16 %v71
    %v102 = vunpack.c.l.b16 %v72
    %v103 = vunpack.c.l.b16 %v73
    %v104 = vpack.c.b16 %v92, %v91
    %v105 = vpack.c.b16 %v94, %v93
    %v106 = vpack.c.b16 %v96, %v95
    %v107 = vpack.c.b16 %v98, %v97
    %v108 = vpack.c.b16 %v100, %v99
    %v109 = vpack.c.b16 %v102, %v101
    %v110 = vpack.c.b16 %v103, %v103
    %vm117 = vcmask 818176
    %v119 = vsel %vm117, %v60, 0
    %vm121 = vcmask 1041408
    %v123 = vsel %vm121, %v110, 0
    %125 = vmatpush.bf16.msra.mxu0 0
    %126 = vmatpush.bf16.msra.mxu0 %v123
    %127 = vmatpush.bf16.msra.mxu0 %v109
    %128 = vmatpush.bf16.msra.mxu0 %v108
    %129 = vmatpush.bf16.msra.mxu0 %v107
    %130 = vmatpush.bf16.msra.mxu0 %v106
    %131 = vmatpush.bf16.msra.mxu0 %v105
    %132 = vmatpush.bf16.msra.mxu0 %v104
    %133 = vmatmul.bf16.gmra.mxu0 %v119
    %v134 = vpop.f32.mrf.mxu0
    %v135 = vadd.f32 %v76, %v134
    %v136 = vpop.f32.mrf.mxu0
    %137 = vdwg.mxu0
    %v138 = vmax.f32 %v135, 0.0
    %v139 = vpack.c.bf16 %v138, %v138
    %v140 = vld [vmem:[%s3] sm:$0xf]
    %v141 = vld [vmem:[%s3 + $0x4] sm:$0xf]
    %v142 = vld [vmem:[%s3 + $0x8] sm:$0xf]
    %v143 = vld [vmem:[%s3 + $0xc] sm:$0xf]
    %v144 = vld [vmem:[%s3 + $0x10] sm:$0xf]
    %v145 = vld [vmem:[%s3 + $0x14] sm:$0xf]
    %v146 = vld [vmem:[%s3 + $0x18] sm:$0xf]
    %v147 = vld [vmem:[%s3 + $0x1c] sm:$0xf]
    %v148 = vld [vmem:[%s3 + $0x20] sm:$0xf]
    %v149 = vld [vmem:[%s3 + $0x24] sm:$0xf]
    %v150 = vld [vmem:[%s3 + $0x28] sm:$0xf]
    %v151 = vld [vmem:[%s3 + $0x2c] sm:$0xf]
    %v152 = vld [vmem:[%s3 + $0x30] sm:$0xf]
    %v153 = vld [vmem:[%s3 + $0x34] sm:$0xf]
    %v154 = vld [vmem:[%s3 + $0x38] sm:$0xf]
    %v155 = vld [vmem:[%s3 + $0x3c] sm:$0xf]
    %v156 = vld [vmem:[%s4] sm:$0x1]
    %v158 = vperm.slane %v156, 0
    %v176 = vunpack.c.l.b16 %v140
    %v177 = vunpack.c.l.b16 %v141
    %v178 = vunpack.c.l.b16 %v142
    %v179 = vunpack.c.l.b16 %v143
    %v180 = vunpack.c.l.b16 %v144
    %v181 = vunpack.c.l.b16 %v145
    %v182 = vunpack.c.l.b16 %v146
    %v183 = vunpack.c.l.b16 %v147
    %v184 = vunpack.c.l.b16 %v148
    %v185 = vunpack.c.l.b16 %v149
    %v186 = vunpack.c.l.b16 %v150
    %v187 = vunpack.c.l.b16 %v151
    %v188 = vunpack.c.l.b16 %v152
    %v189 = vunpack.c.l.b16 %v153
    %v190 = vunpack.c.l.b16 %v154
    %v191 = vunpack.c.l.b16 %v155
    %v192 = vpack.c.b16 %v177, %v176
    %v193 = vpack.c.b16 %v179, %v178
    %v194 = vpack.c.b16 %v181, %v180
    %v195 = vpack.c.b16 %v183, %v182
    %v196 = vpack.c.b16 %v185, %v184
    %v197 = vpack.c.b16 %v187, %v186
    %v198 = vpack.c.b16 %v189, %v188
    %v199 = vpack.c.b16 %v191, %v190
    %208 = vmatpush.bf16.msra.mxu0 %v199
    %209 = vmatpush.bf16.msra.mxu0 %v198
    %210 = vmatpush.bf16.msra.mxu0 %v197
    %211 = vmatpush.bf16.msra.mxu0 %v196
    %212 = vmatpush.bf16.msra.mxu0 %v195
    %213 = vmatpush.bf16.msra.mxu0 %v194
    %214 = vmatpush.bf16.msra.mxu0 %v193
    %215 = vmatpush.bf16.msra.mxu0 %v192
    %216 = vmatmul.bf16.gmra.mxu0 %v139
    %v217 = vpop.f32.mrf.mxu0
    %v218 = vadd.f32 %v158, %v217
    %v219 = vpop.f32.mrf.mxu0
    %220 = vdwg.mxu0
    %v221 = vmax.f32 %v218, 0.0
    %v222 = vpack.c.bf16 %v221, %v221
    %v223 = vld [vmem:[%s5] sm:$0xf]
    %v224 = vld [vmem:[%s5 + $0x4] sm:$0xf]
    %v225 = vld [vmem:[%s5 + $0x8] sm:$0xf]
    %v226 = vld [vmem:[%s5 + $0xc] sm:$0xf]
    %v227 = vld [vmem:[%s5 + $0x10] sm:$0xf]
    %v228 = vld [vmem:[%s5 + $0x14] sm:$0xf]
    %v229 = vld [vmem:[%s5 + $0x18] sm:$0xf]
    %v230 = vld [vmem:[%s5 + $0x1c] sm:$0xf]
    %v231 = vld [vmem:[%s6] sm:$0x1]
    %v233 = vperm.slane %v231, 0
    %v243 = vunpack.c.l.b16 %v223
    %v244 = vunpack.c.l.b16 %v224
    %v245 = vunpack.c.l.b16 %v225
    %v246 = vunpack.c.l.b16 %v226
    %v247 = vunpack.c.l.b16 %v227
    %v248 = vunpack.c.l.b16 %v228
    %v249 = vunpack.c.l.b16 %v229
    %v250 = vunpack.c.l.b16 %v230
    %v251 = vpack.c.b16 %v244, %v243
    %v252 = vpack.c.b16 %v246, %v245
    %v253 = vpack.c.b16 %v248, %v247
    %v254 = vpack.c.b16 %v250, %v249
    %vm259 = vcmask 523264
    %v261 = vsel %vm259, %v222, 0
    %263 = vmatpush.bf16.msra.mxu0 0
    %264 = vmatpush.bf16.msra.mxu0 0
    %265 = vmatpush.bf16.msra.mxu0 0
    %266 = vmatpush.bf16.msra.mxu0 0
    %267 = vmatpush.bf16.msra.mxu0 %v254
    %268 = vmatpush.bf16.msra.mxu0 %v253
    %269 = vmatpush.bf16.msra.mxu0 %v252
    %270 = vmatpush.bf16.msra.mxu0 %v251
    %271 = vmatmul.bf16.gmra.mxu0 %v261
    %v272 = vpop.f32.mrf.mxu0
    %v273 = vadd.f32 %v233, %v272
    %v274 = vpop.f32.mrf.mxu0
    %275 = vdwg.mxu0
    %v276 = vmax.f32 %v273, 0.0
    %v277 = vpack.c.bf16 %v276, %v276
    %v278 = vld [vmem:[#allocation2] sm:$0xff]
    %v279 = vld [vmem:[#allocation2 + $0x8] sm:$0xff]
    %v280 = vld [vmem:[#allocation2 + $0x10] sm:$0xff]
    %v281 = vld [vmem:[#allocation2 + $0x18] sm:$0xff]
    %v282 = vld [vmem:[#allocation2 + $0x20] sm:$0xff]
    %v283 = vld [vmem:[#allocation2 + $0x28] sm:$0xff]
    %v284 = vld [vmem:[#allocation2 + $0x30] sm:$0xff]
    %v285 = vld [vmem:[#allocation2 + $0x38] sm:$0xff]
    %v286 = vld [vmem:[#allocation2 + $0x40] sm:$0xff]
    %v287 = vld [vmem:[#allocation2 + $0x48] sm:$0xff]
    %v288 = vld [vmem:[#allocation2 + $0x50] sm:$0xff]
    %v289 = vld [vmem:[#allocation2 + $0x58] sm:$0xff]
    %v290 = vld [vmem:[#allocation2 + $0x60] sm:$0xff]
    %v291 = vld [vmem:[#allocation2 + $0x68] sm:$0xff]
    %v292 = vld [vmem:[#allocation2 + $0x70] sm:$0xff]
    %v293 = vld [vmem:[#allocation2 + $0x78] sm:$0xff]
    %v294 = vld [vmem:[%s8] sm:$0xf]
    %v296 = vperm.slane %v294, 0
    %v297 = vperm.slane %v294, 1
    %v298 = vperm.slane %v294, 2
    %v299 = vperm.slane %v294, 3
    %v320 = vunpack.c.l.b16 %v278
    %v321 = vunpack.c.h.b16 %v278
    %v322 = vunpack.c.l.b16 %v279
    %v323 = vunpack.c.h.b16 %v279
    %v324 = vunpack.c.l.b16 %v280
    %v325 = vunpack.c.h.b16 %v280
    %v326 = vunpack.c.l.b16 %v281
    %v327 = vunpack.c.h.b16 %v281
    %v328 = vunpack.c.l.b16 %v282
    %v329 = vunpack.c.h.b16 %v282
    %v330 = vunpack.c.l.b16 %v283
    %v331 = vunpack.c.h.b16 %v283
    %v332 = vunpack.c.l.b16 %v284
    %v333 = vunpack.c.h.b16 %v284
    %v334 = vunpack.c.l.b16 %v285
    %v335 = vunpack.c.h.b16 %v285
    %v336 = vunpack.c.l.b16 %v286
    %v337 = vunpack.c.h.b16 %v286
    %v338 = vunpack.c.l.b16 %v287
    %v339 = vunpack.c.h.b16 %v287
    %v340 = vunpack.c.l.b16 %v288
    %v341 = vunpack.c.h.b16 %v288
    %v342 = vunpack.c.l.b16 %v289
    %v343 = vunpack.c.h.b16 %v289
    %v344 = vunpack.c.l.b16 %v290
    %v345 = vunpack.c.h.b16 %v290
    %v346 = vunpack.c.l.b16 %v291
    %v347 = vunpack.c.h.b16 %v291
    %v348 = vunpack.c.l.b16 %v292
    %v349 = vunpack.c.h.b16 %v292
    %v350 = vunpack.c.l.b16 %v293
    %v351 = vunpack.c.h.b16 %v293
    %v352 = vpack.c.b16 %v324, %v320
    %v353 = vpack.c.b16 %v325, %v321
    %v354 = vpack.c.b16 %v326, %v322
    %v355 = vpack.c.b16 %v327, %v323
    %v356 = vpack.c.b16 %v332, %v328
    %v357 = vpack.c.b16 %v333, %v329
    %v358 = vpack.c.b16 %v334, %v330
    %v359 = vpack.c.b16 %v335, %v331
    %v360 = vpack.c.b16 %v340, %v336
    %v361 = vpack.c.b16 %v341, %v337
    %v362 = vpack.c.b16 %v342, %v338
    %v363 = vpack.c.b16 %v343, %v339
    %v364 = vpack.c.b16 %v348, %v344
    %v365 = vpack.c.b16 %v349, %v345
    %v366 = vpack.c.b16 %v350, %v346
    %v367 = vpack.c.b16 %v351, %v347
    %v385 = vsel %vm259, %v277, 0
    %387 = vmatpush.bf16.msra.mxu0 0
    %388 = vmatpush.bf16.msra.mxu0 0
    %389 = vmatpush.bf16.msra.mxu0 0
    %390 = vmatpush.bf16.msra.mxu0 0
    %391 = vmatpush.bf16.msra.mxu0 %v364
    %392 = vmatpush.bf16.msra.mxu0 %v360
    %393 = vmatpush.bf16.msra.mxu0 %v356
    %394 = vmatpush.bf16.msra.mxu0 %v352
    %395 = vmatmul.bf16.gmra.mxu0 %v385
    %v396 = vpop.f32.mrf.mxu0
    %v397 = vadd.f32 %v296, %v396
    %v398 = vpop.f32.mrf.mxu0
    %399 = vdwg.mxu0
    %400 = vmatpush.bf16.msra.mxu0 0
    %401 = vmatpush.bf16.msra.mxu0 0
    %402 = vmatpush.bf16.msra.mxu0 0
    %403 = vmatpush.bf16.msra.mxu0 0
    %404 = vmatpush.bf16.msra.mxu0 %v365
    %405 = vmatpush.bf16.msra.mxu0 %v361
    %406 = vmatpush.bf16.msra.mxu0 %v357
    %407 = vmatpush.bf16.msra.mxu0 %v353
    %408 = vmatmul.bf16.gmra.mxu0 %v385
    %v409 = vpop.f32.mrf.mxu0
    %v410 = vadd.f32 %v297, %v409
    %v411 = vpop.f32.mrf.mxu0
    %412 = vdwg.mxu0
    %413 = vmatpush.bf16.msra.mxu0 0
    %414 = vmatpush.bf16.msra.mxu0 0
    %415 = vmatpush.bf16.msra.mxu0 0
    %416 = vmatpush.bf16.msra.mxu0 0
    %417 = vmatpush.bf16.msra.mxu0 %v366
    %418 = vmatpush.bf16.msra.mxu0 %v362
    %419 = vmatpush.bf16.msra.mxu0 %v358
    %420 = vmatpush.bf16.msra.mxu0 %v354
    %421 = vmatmul.bf16.gmra.mxu0 %v385
    %v422 = vpop.f32.mrf.mxu0
    %v423 = vadd.f32 %v298, %v422
    %v424 = vpop.f32.mrf.mxu0
    %425 = vdwg.mxu0
    %426 = vmatpush.bf16.msra.mxu0 0
    %427 = vmatpush.bf16.msra.mxu0 0
    %428 = vmatpush.bf16.msra.mxu0 0
    %429 = vmatpush.bf16.msra.mxu0 0
    %430 = vmatpush.bf16.msra.mxu0 %v367
    %431 = vmatpush.bf16.msra.mxu0 %v363
    %432 = vmatpush.bf16.msra.mxu0 %v359
    %433 = vmatpush.bf16.msra.mxu0 %v355
    %434 = vmatmul.bf16.gmra.mxu0 %v385
    %v435 = vpop.f32.mrf.mxu0
    %v436 = vadd.f32 %v299, %v435
    %v437 = vpop.f32.mrf.mxu0
    %438 = vdwg.mxu0
    %v443 = vrot.slane %v410, 6
    %v444 = vrot.slane %v423, 4
    %v445 = vrot.slane %v436, 2
    %v446 = vsel %vm121, %v397, %v443
    %vm447 = vcmask 1045508
    %v448 = vsel %vm447, %v444, %v445
    %vm449 = vcmask 1043456
    %v450 = vsel %vm449, %v446, %v448
    %vm452 = vcmask 1043458
    %vm453 = vmor %vm452, %vm121
    %vm454 = vmor %vm447, %vm453
    %vm455 = vcmask 130054
    %vm456 = vmor %vm455, %vm454
    %457 = vst.msk [vmem:[#allocation5] sm:$0xff] %vm456, %v450
    %v458 = vld [vmem:[%s9] sm:$0xf]
    %v459 = vld [vmem:[%s9 + $0x4] sm:$0xf]
    %v460 = vld [vmem:[%s9 + $0x8] sm:$0xf]
    %v461 = vld [vmem:[%s9 + $0xc] sm:$0xf]
    %v462 = vld [vmem:[%s9 + $0x10] sm:$0xf]
    %v463 = vld [vmem:[%s9 + $0x14] sm:$0xf]
    %v464 = vld [vmem:[%s9 + $0x18] sm:$0xf]
    %v465 = vld [vmem:[%s9 + $0x1c] sm:$0xf]
    %v466 = vld [vmem:[%s10] sm:$0x1]
    %v468 = vperm.slane %v466, 0
    %v471 = vunpack.c.l.b16 %v277
    %v472 = vpack.c.b16 %v471, %v471
    %473 = vrot.lane.b32.xlu0 %v472, 64
    %v474 = vpop.permute.xlu0 %473
    %v483 = vunpack.c.l.b16 %v458
    %v484 = vunpack.c.l.b16 %v459
    %v485 = vunpack.c.l.b16 %v460
    %v486 = vunpack.c.l.b16 %v461
    %v487 = vunpack.c.l.b16 %v462
    %v488 = vunpack.c.l.b16 %v463
    %v489 = vunpack.c.l.b16 %v464
    %v490 = vunpack.c.l.b16 %v465
    %v491 = vpack.c.b16 %v484, %v483
    %v492 = vpack.c.b16 %v486, %v485
    %v493 = vpack.c.b16 %v488, %v487
    %v494 = vpack.c.b16 %v490, %v489
    %v500 = vsel %vm259, %v474, 0
    %502 = vmatpush.bf16.msra.mxu0 0
    %503 = vmatpush.bf16.msra.mxu0 0
    %504 = vmatpush.bf16.msra.mxu0 0
    %505 = vmatpush.bf16.msra.mxu0 0
    %506 = vmatpush.bf16.msra.mxu0 %v494
    %507 = vmatpush.bf16.msra.mxu0 %v493
    %508 = vmatpush.bf16.msra.mxu0 %v492
    %509 = vmatpush.bf16.msra.mxu0 %v491
    %510 = vmatmul.bf16.gmra.mxu0 %v500
    %v511 = vpop.f32.mrf.mxu0
    %v512 = vadd.f32 %v468, %v511
    %v513 = vpop.f32.mrf.mxu0
    %514 = vdwg.mxu0
    %vm515 = vcmask 91136
    %516 = vst.msk [vmem:[#allocation6] sm:$0x3] %vm515, %v512
    // Predicated region
    $region50: #{tpu_custom_call.1} parent=1 // pred_check
      _
    $region51: #{tpu_custom_call.1} parent=1 // pred_check_branch
      %518 = sbr.rel (0) target = $region53
    $region52: #{tpu_custom_call.1} parent=1 // pred_region
      %520 = vsyncadd [#allocation4], 0
      %s522 = sshll.u32 [#allocation5], 4
      %s523 = int_to_ptr.vmem [resolvable:$true] %s522
      %s524 = sshll.u32 %s11, 4
      %s525 = int_to_ptr.hbm [resolvable:$true] %s524
      %527 = dma.vmem_to_hbm [thread:$0]  %s523, 128, %s525, [#allocation4]
    $region53: #{tpu_custom_call.1} parent=1 // pred_fallthru
      _
    // Predicated region
    $region54: #{tpu_custom_call.1} parent=1 // pred_check
      _
    $region55: #{tpu_custom_call.1} parent=1 // pred_check_branch
      %529 = sbr.rel (0) target = $region57
    $region56: #{tpu_custom_call.1} parent=1 // pred_region
      %531 = vsyncadd [#allocation7], 0
      %s533 = sshll.u32 [#allocation6], 4
      %s534 = int_to_ptr.vmem [resolvable:$true] %s533
      %s535 = sshll.u32 %s12, 4
      %s536 = int_to_ptr.hbm [resolvable:$true] %s535
      %538 = dma.vmem_to_hbm [thread:$0]  %s534, 32, %s536, [#allocation7]
    $region57: #{tpu_custom_call.1} parent=1 // pred_fallthru
      _
    // Predicated region
    $region58: #{tpu_custom_call.1} parent=1 // pred_check
      _
    $region59: #{tpu_custom_call.1} parent=1 // pred_check_branch
      %540 = sbr.rel (0) target = $region61
    $region60: #{tpu_custom_call.1} parent=1 // pred_region
      %542 = dma.done [#allocation4], 128
    $region61: #{tpu_custom_call.1} parent=1 // pred_fallthru
      _
    // Predicated region
    $region62: #{tpu_custom_call.1} parent=1 // pred_check
      _
    $region63: #{tpu_custom_call.1} parent=1 // pred_check_branch
      %544 = sbr.rel (0) target = $region65
    $region64: #{tpu_custom_call.1} parent=1 // pred_region
      %546 = dma.done [#allocation7], 32
    $region65: #{tpu_custom_call.1} parent=1 // pred_fallthru
      _
    %547 = vsyncpa [#allocation3], 1
    %548 = vsyncpa [#allocation4], 1
    %549 = vsyncpa [#allocation7], 1

</llo_original>
